<compile_context>
chip_gen: v5e
topology: v5e:2x2
jax: 0.10.0
libtpu: 0.0.40
codegen_flags: <defaults>
</compile_context>

<pallas_src>
import functools

import jax
import jax.numpy as jnp
from jax.experimental import pallas as pl
from jax.experimental.pallas import tpu as pltpu


_MIN_KERNEL_ELEMS = 128 * 1024        # below this, fused XLA elementwise wins
_TARGET_TILE_BYTES = 4 * 1024 * 1024  # ~86% of HBM roofline, 2x fewer steps than 2 MiB
_VMEM_LIMIT_BYTES = 32 * 1024 * 1024  # 16 MiB live buffers + headroom; safe on v5e/v6e/v7x


def _exp_kernel(x_ref, o_ref, *, eps):
    x = x_ref[...]
    # exp -> EUP, +eps -> VPU; both hidden under the HBM-bound pipeline.
    o_ref[...] = jnp.exp(x) + jnp.asarray(eps, dtype=x.dtype)


def _exp_reference(x, eps):
    # Fused XLA elementwise path (already at the HBM roofline for small /
    # awkwardly-sized inputs).
    return jnp.exp(x) + jnp.asarray(eps, dtype=x.dtype)


def exp_activation(x: jax.Array, eps: float = 1e-5, *,
                   min_kernel_elems: int = _MIN_KERNEL_ELEMS) -> jax.Array:
    """Compute exp(x) + eps (matches torch.exp(x) + eps) with a Pallas TPU kernel."""
    orig_shape = x.shape
    dtype = x.dtype
    total = x.size

    # (1) Empty / tiny inputs: pallas_call fixed launch + per-step overhead
    #     dominates; plain fused XLA is faster.
    if total < max(min_kernel_elems, 1):
        return _exp_reference(x, eps)

    # (2) Non-128-divisible totals: avoid the pad + slice epilogue, which
    #     would add ~2 extra full HBM passes outside the kernel.  The fused
    #     XLA path is the fastest option for this (rare) case.
    if total % 128 != 0:
        return _exp_reference(x, eps)

    # ---- lane-dense 2D layout: widest lane count (mult of 128) dividing total
    lanes = 128
    for cand in (2048, 1024, 512, 256):
        if total % cand == 0:
            lanes = cand
            break
    rows = total // lanes
    x2 = x.reshape(rows, lanes)          # contiguous reshape: no HBM copy

    # ---- tile size: ~4 MiB, rows rounded to the dtype's sublane packing ----
    itemsize = jnp.dtype(dtype).itemsize
    row_mult = max(8, 32 // itemsize)    # f32: 8, bf16: 16, int8/fp8: 32
    max_tr = max(row_mult,
                 (_TARGET_TILE_BYTES // (lanes * itemsize)) // row_mult * row_mult)
    if rows <= max_tr:
        tr = rows                        # full row extent: always a legal block
    else:
        tr = max_tr                      # fixed tile; ragged edge handled by cdiv grid

    grid = (pl.cdiv(rows, tr),)

    out = pl.pallas_call(
        functools.partial(_exp_kernel, eps=eps),
        out_shape=jax.ShapeDtypeStruct((rows, lanes), dtype),
        grid_spec=pltpu.PrefetchScalarGridSpec(
            num_scalar_prefetch=0,
            grid=grid,
            in_specs=[pl.BlockSpec((tr, lanes), lambda i: (i, 0))],
            out_specs=pl.BlockSpec((tr, lanes), lambda i: (i, 0)),
        ),
        compiler_params=pltpu.CompilerParams(
            # TODO(synk): on v7x, (pltpu.CORE_PARALLEL,) can shard the row grid
            # across the 2 TensorCores for up to ~2x streaming bandwidth.
            dimension_semantics=("parallel",),
            vmem_limit_bytes=_VMEM_LIMIT_BYTES,
        ),
        cost_estimate=pl.CostEstimate(
            flops=total,
            transcendentals=total,
            bytes_accessed=2 * total * itemsize),
    )(x2)

    return out.reshape(orig_shape)


if __name__ == "__main__":
    key = jax.random.PRNGKey(0)
    k1, k2, k3 = jax.random.split(key, 3)
    eps = 1e-5

    # Kernel path: positive-rate decoder output (batch=32, genes=8000), f32.
    x = jax.random.normal(k1, (32, 8000), dtype=jnp.float32)
    y = jax.block_until_ready(exp_activation(x, eps=eps))
    ref = jnp.exp(x) + eps
    assert y.shape == x.shape and y.dtype == x.dtype
    assert jnp.allclose(y, ref, rtol=1e-5, atol=1e-6)

    # Tiny input -> plain-JAX fallback path.
    xs = jax.random.normal(k2, (2, 4, 16, 16), dtype=jnp.float32)
    ys = jax.block_until_ready(exp_activation(xs, eps=eps))
    assert jnp.allclose(ys, jnp.exp(xs) + eps, rtol=1e-5, atol=1e-6)

    # Same tiny input forced through the Pallas kernel (full-extent block path).
    ysk = jax.block_until_ready(exp_activation(xs, eps=eps, min_kernel_elems=0))
    assert jnp.allclose(ysk, jnp.exp(xs) + eps, rtol=1e-5, atol=1e-6)

    # Non-128-divisible element count -> fallback (no pad/slice HBM overhead).
    xo = jax.random.normal(k3, (7, 311), dtype=jnp.float32)
    yo = jax.block_until_ready(exp_activation(xo, eps=eps))
    assert jnp.allclose(yo, jnp.exp(xo) + eps, rtol=1e-5, atol=1e-6)

    # bf16 kernel path: I/O stays bf16, eps added in-dtype like torch.
    xb = jax.random.normal(k1, (32, 8000), dtype=jnp.bfloat16)
    yb = jax.block_until_ready(exp_activation(xb, eps=eps))
    refb = (jnp.exp(xb.astype(jnp.float32)) + eps).astype(jnp.bfloat16)
    assert yb.dtype == jnp.bfloat16
    assert jnp.allclose(yb.astype(jnp.float32), refb.astype(jnp.float32),
                        rtol=2e-2, atol=2e-2)

    print("KERNEL_OK")
</pallas_src>

<mosaic_0001>
module attributes {stable_mosaic.version = 11 : i64} {
  func.func @_exp_kernel(%arg0: i32, %arg1: memref<125x2048xf32, #tpu.memory_space<vmem>>, %arg2: memref<125x2048xf32, #tpu.memory_space<vmem>>) attributes {dimension_semantics = [#tpu.dimension_semantics<parallel>], iteration_bounds = array<i64: 1>, scalar_prefetch = 0 : i64, scratch_operands = 0 : i64, tpu.core_type = #tpu.core_type<tc>, window_params = [{transform_indices = @transform_0, window_bounds = array<i64: 125, 2048>}, {transform_indices = @transform_1, window_bounds = array<i64: 125, 2048>}]} {
    %c0 = arith.constant 0 : index
    %c0_0 = arith.constant 0 : index
    %0 = vector.load %arg1[%c0, %c0_0] : memref<125x2048xf32, #tpu.memory_space<vmem>>, vector<125x2048xf32>
    %1 = math.exp %0 : vector<125x2048xf32>
    %cst = arith.constant 9.99999974E-6 : f32
    %2 = vector.broadcast %cst : f32 to vector<125x2048xf32>
    %3 = arith.addf %1, %2 : vector<125x2048xf32>
    %c0_1 = arith.constant 0 : index
    %c0_2 = arith.constant 0 : index
    %4 = vector.load %arg2[%c0_1, %c0_2] : memref<125x2048xf32, #tpu.memory_space<vmem>>, vector<125x2048xf32>
    tpu.vector_store %arg2[%c0_1, %c0_2], %3 {strides = array<i32>} : memref<125x2048xf32, #tpu.memory_space<vmem>>, vector<125x2048xf32>,
    return
  }
  func.func @transform_0(%arg0: i32) -> (i32, i32) {
    %c0_i32 = arith.constant 0 : i32
    %c0_i32_0 = arith.constant 0 : i32
    return %arg0, %c0_i32 : i32, i32
  }
  func.func @transform_1(%arg0: i32) -> (i32, i32) {
    %c0_i32 = arith.constant 0 : i32
    %c0_i32_0 = arith.constant 0 : i32
    return %arg0, %c0_i32 : i32, i32
  }
}

</mosaic_0001>

<llo_original>
// kernel: tpu_custom_call.1
$region0: #{tpu_custom_call.1}
  #allocation0 [shape = 'u32[]', space=smem, size = 0x4, offset = 0x4, fixed_abs, tag = 'smem constant byte address 0x4 - core index']
  #allocation1 [shape = 'u32[72,128]{1,0:T(1,128)}', space=vmem, size = 0x9000, scoped, tag = 'internal scratch']
  %s0 = inlined_call_operand.hbm [shape: f32[125,2048], index: 0, kind: input, shape index: {}]
  %s1 = inlined_call_operand.hbm [shape: f32[125,2048], index: 1, kind: output, shape index: {}]
  %s2 = sld [smem:[#allocation0]]
  $region18: #{tpu_custom_call.1} parent=0
    _
  %s4 = ssub.s32 1, %s2
  %s5 = scalar_select 0, %s4, %s2
  $region1: #{tpu_custom_call.1} parent=0
    #allocation2 [shape = 'u8[1048576]{0}', space=vmem, size = 0x100000, scoped, tag = 'input window, operand 0, single buffered']
    #allocation3 [shape = 's32[1]{0}', space=sflag, size = 0x4, scoped, tag = 'scoped memory for tpu_custom_call.1']
    #allocation4 [shape = 's32[1]{0}', space=sflag, size = 0x4, scoped, tag = 'scoped memory for tpu_custom_call.1']
    #allocation5 [shape = 'u8[1048576]{0}', space=vmem, size = 0x100000, scoped, tag = 'output window, operand 0, single buffered']
    %6 = vsyncpa [#allocation3], 0
    %7 = vsyncpa [#allocation4], 0
    // Predicated region
    $region2: #{tpu_custom_call.1} parent=1 // pred_check
      _
    $region3: #{tpu_custom_call.1} parent=1 // pred_check_branch
      %9 = sbr.rel (0) target = $region5
    $region4: #{tpu_custom_call.1} parent=1 // pred_region
      %11 = vsyncadd [#allocation3], 0
      %s12 = sshll.u32 %s0, 4
      %s13 = int_to_ptr.hbm [resolvable:$true] %s12
      %s14 = sshll.u32 [#allocation2], 4
      %s15 = int_to_ptr.vmem [resolvable:$true] %s14
      %20 = dma.hbm_to_vmem [thread:$0]  %s13, 32768, %s15, [#allocation3], 2048, 2048, 128
    $region5: #{tpu_custom_call.1} parent=1 // pred_fallthru
      _
    // Predicated region
    $region6: #{tpu_custom_call.1} parent=1 // pred_check
      _
    $region7: #{tpu_custom_call.1} parent=1 // pred_check_branch
      %22 = sbr.rel (0) target = $region9
    $region8: #{tpu_custom_call.1} parent=1 // pred_region
      %24 = dma.done [#allocation3], 32768
    $region9: #{tpu_custom_call.1} parent=1 // pred_fallthru
      _
    %v25 = vld [vmem:[#allocation2] sm:$0xff]
    %v26 = vld [vmem:[#allocation2 + $0x8] sm:$0xff]
    %v27 = vld [vmem:[#allocation2 + $0x10] sm:$0xff]
    %v28 = vld [vmem:[#allocation2 + $0x18] sm:$0xff]
    %v29 = vld [vmem:[#allocation2 + $0x20] sm:$0xff]
    %v30 = vld [vmem:[#allocation2 + $0x28] sm:$0xff]
    %v31 = vld [vmem:[#allocation2 + $0x30] sm:$0xff]
    %v32 = vld [vmem:[#allocation2 + $0x38] sm:$0xff]
    %v33 = vld [vmem:[#allocation2 + $0x40] sm:$0xff]
    %v34 = vld [vmem:[#allocation2 + $0x48] sm:$0xff]
    %v35 = vld [vmem:[#allocation2 + $0x50] sm:$0xff]
    %v36 = vld [vmem:[#allocation2 + $0x58] sm:$0xff]
    %v37 = vld [vmem:[#allocation2 + $0x60] sm:$0xff]
    %v38 = vld [vmem:[#allocation2 + $0x68] sm:$0xff]
    %v39 = vld [vmem:[#allocation2 + $0x70] sm:$0xff]
    %v40 = vld [vmem:[#allocation2 + $0x78] sm:$0xff]
    %v41 = vld [vmem:[#allocation2 + $0x80] sm:$0xff]
    %v42 = vld [vmem:[#allocation2 + $0x88] sm:$0xff]
    %v43 = vld [vmem:[#allocation2 + $0x90] sm:$0xff]
    %v44 = vld [vmem:[#allocation2 + $0x98] sm:$0xff]
    %v45 = vld [vmem:[#allocation2 + $0xa0] sm:$0xff]
    %v46 = vld [vmem:[#allocation2 + $0xa8] sm:$0xff]
    %v47 = vld [vmem:[#allocation2 + $0xb0] sm:$0xff]
    %v48 = vld [vmem:[#allocation2 + $0xb8] sm:$0xff]
    %v49 = vld [vmem:[#allocation2 + $0xc0] sm:$0xff]
    %v50 = vld [vmem:[#allocation2 + $0xc8] sm:$0xff]
    %v51 = vld [vmem:[#allocation2 + $0xd0] sm:$0xff]
    %v52 = vld [vmem:[#allocation2 + $0xd8] sm:$0xff]
    %v53 = vld [vmem:[#allocation2 + $0xe0] sm:$0xff]
    %v54 = vld [vmem:[#allocation2 + $0xe8] sm:$0xff]
    %v55 = vld [vmem:[#allocation2 + $0xf0] sm:$0xff]
    %v56 = vld [vmem:[#allocation2 + $0xf8] sm:$0xff]
    %v57 = vld [vmem:[#allocation2 + $0x100] sm:$0xff]
    %v58 = vld [vmem:[#allocation2 + $0x108] sm:$0xff]
    %v59 = vld [vmem:[#allocation2 + $0x110] sm:$0xff]
    %v60 = vld [vmem:[#allocation2 + $0x118] sm:$0xff]
    %v61 = vld [vmem:[#allocation2 + $0x120] sm:$0xff]
    %v62 = vld [vmem:[#allocation2 + $0x128] sm:$0xff]
    %v63 = vld [vmem:[#allocation2 + $0x130] sm:$0xff]
    %v64 = vld [vmem:[#allocation2 + $0x138] sm:$0xff]
    %v65 = vld [vmem:[#allocation2 + $0x140] sm:$0xff]
    %v66 = vld [vmem:[#allocation2 + $0x148] sm:$0xff]
    %v67 = vld [vmem:[#allocation2 + $0x150] sm:$0xff]
    %v68 = vld [vmem:[#allocation2 + $0x158] sm:$0xff]
    %v69 = vld [vmem:[#allocation2 + $0x160] sm:$0xff]
    %v70 = vld [vmem:[#allocation2 + $0x168] sm:$0xff]
    %v71 = vld [vmem:[#allocation2 + $0x170] sm:$0xff]
    %v72 = vld [vmem:[#allocation2 + $0x178] sm:$0xff]
    %v73 = vld [vmem:[#allocation2 + $0x180] sm:$0xff]
    %v74 = vld [vmem:[#allocation2 + $0x188] sm:$0xff]
    %v75 = vld [vmem:[#allocation2 + $0x190] sm:$0xff]
    %v76 = vld [vmem:[#allocation2 + $0x198] sm:$0xff]
    %v77 = vld [vmem:[#allocation2 + $0x1a0] sm:$0xff]
    %v78 = vld [vmem:[#allocation2 + $0x1a8] sm:$0xff]
    %v79 = vld [vmem:[#allocation2 + $0x1b0] sm:$0xff]
    %v80 = vld [vmem:[#allocation2 + $0x1b8] sm:$0xff]
    %v81 = vld [vmem:[#allocation2 + $0x1c0] sm:$0xff]
    %v82 = vld [vmem:[#allocation2 + $0x1c8] sm:$0xff]
    %v83 = vld [vmem:[#allocation2 + $0x1d0] sm:$0xff]
    %v84 = vld [vmem:[#allocation2 + $0x1d8] sm:$0xff]
    %v85 = vld [vmem:[#allocation2 + $0x1e0] sm:$0xff]
    %v86 = vld [vmem:[#allocation2 + $0x1e8] sm:$0xff]
    %v87 = vld [vmem:[#allocation2 + $0x1f0] sm:$0xff]
    %v88 = vld [vmem:[#allocation2 + $0x1f8] sm:$0xff]
    %v89 = vld [vmem:[#allocation2 + $0x200] sm:$0xff]
    %v90 = vld [vmem:[#allocation2 + $0x208] sm:$0xff]
    %v91 = vld [vmem:[#allocation2 + $0x210] sm:$0xff]
    %v92 = vld [vmem:[#allocation2 + $0x218] sm:$0xff]
    %v93 = vld [vmem:[#allocation2 + $0x220] sm:$0xff]
    %v94 = vld [vmem:[#allocation2 + $0x228] sm:$0xff]
    %v95 = vld [vmem:[#allocation2 + $0x230] sm:$0xff]
    %v96 = vld [vmem:[#allocation2 + $0x238] sm:$0xff]
    %v97 = vld [vmem:[#allocation2 + $0x240] sm:$0xff]
    %v98 = vld [vmem:[#allocation2 + $0x248] sm:$0xff]
    %v99 = vld [vmem:[#allocation2 + $0x250] sm:$0xff]
    %v100 = vld [vmem:[#allocation2 + $0x258] sm:$0xff]
    %v101 = vld [vmem:[#allocation2 + $0x260] sm:$0xff]
    %v102 = vld [vmem:[#allocation2 + $0x268] sm:$0xff]
    %v103 = vld [vmem:[#allocation2 + $0x270] sm:$0xff]
    %v104 = vld [vmem:[#allocation2 + $0x278] sm:$0xff]
    %v105 = vld [vmem:[#allocation2 + $0x280] sm:$0xff]
    %v106 = vld [vmem:[#allocation2 + $0x288] sm:$0xff]
    %v107 = vld [vmem:[#allocation2 + $0x290] sm:$0xff]
    %v108 = vld [vmem:[#allocation2 + $0x298] sm:$0xff]
    %v109 = vld [vmem:[#allocation2 + $0x2a0] sm:$0xff]
    %v110 = vld [vmem:[#allocation2 + $0x2a8] sm:$0xff]
    %v111 = vld [vmem:[#allocation2 + $0x2b0] sm:$0xff]
    %v112 = vld [vmem:[#allocation2 + $0x2b8] sm:$0xff]
    %v113 = vld [vmem:[#allocation2 + $0x2c0] sm:$0xff]
    %v114 = vld [vmem:[#allocation2 + $0x2c8] sm:$0xff]
    %v115 = vld [vmem:[#allocation2 + $0x2d0] sm:$0xff]
    %v116 = vld [vmem:[#allocation2 + $0x2d8] sm:$0xff]
    %v117 = vld [vmem:[#allocation2 + $0x2e0] sm:$0xff]
    %v118 = vld [vmem:[#allocation2 + $0x2e8] sm:$0xff]
    %v119 = vld [vmem:[#allocation2 + $0x2f0] sm:$0xff]
    %v120 = vld [vmem:[#allocation2 + $0x2f8] sm:$0xff]
    %v121 = vld [vmem:[#allocation2 + $0x300] sm:$0xff]
    %v122 = vld [vmem:[#allocation2 + $0x308] sm:$0xff]
    %v123 = vld [vmem:[#allocation2 + $0x310] sm:$0xff]
    %v124 = vld [vmem:[#allocation2 + $0x318] sm:$0xff]
    %v125 = vld [vmem:[#allocation2 + $0x320] sm:$0xff]
    %v126 = vld [vmem:[#allocation2 + $0x328] sm:$0xff]
    %v127 = vld [vmem:[#allocation2 + $0x330] sm:$0xff]
    %v128 = vld [vmem:[#allocation2 + $0x338] sm:$0xff]
    %v129 = vld [vmem:[#allocation2 + $0x340] sm:$0xff]
    %v130 = vld [vmem:[#allocation2 + $0x348] sm:$0xff]
    %v131 = vld [vmem:[#allocation2 + $0x350] sm:$0xff]
    %v132 = vld [vmem:[#allocation2 + $0x358] sm:$0xff]
    %v133 = vld [vmem:[#allocation2 + $0x360] sm:$0xff]
    %v134 = vld [vmem:[#allocation2 + $0x368] sm:$0xff]
    %v135 = vld [vmem:[#allocation2 + $0x370] sm:$0xff]
    %v136 = vld [vmem:[#allocation2 + $0x378] sm:$0xff]
    %v137 = vld [vmem:[#allocation2 + $0x380] sm:$0xff]
    %v138 = vld [vmem:[#allocation2 + $0x388] sm:$0xff]
    %v139 = vld [vmem:[#allocation2 + $0x390] sm:$0xff]
    %v140 = vld [vmem:[#allocation2 + $0x398] sm:$0xff]
    %v141 = vld [vmem:[#allocation2 + $0x3a0] sm:$0xff]
    %v142 = vld [vmem:[#allocation2 + $0x3a8] sm:$0xff]
    %v143 = vld [vmem:[#allocation2 + $0x3b0] sm:$0xff]
    %v144 = vld [vmem:[#allocation2 + $0x3b8] sm:$0xff]
    %v145 = vld [vmem:[#allocation2 + $0x3c0] sm:$0xff]
    %v146 = vld [vmem:[#allocation2 + $0x3c8] sm:$0xff]
    %v147 = vld [vmem:[#allocation2 + $0x3d0] sm:$0xff]
    %v148 = vld [vmem:[#allocation2 + $0x3d8] sm:$0xff]
    %v149 = vld [vmem:[#allocation2 + $0x3e0] sm:$0xff]
    %v150 = vld [vmem:[#allocation2 + $0x3e8] sm:$0xff]
    %v151 = vld [vmem:[#allocation2 + $0x3f0] sm:$0xff]
    %v152 = vld [vmem:[#allocation2 + $0x3f8] sm:$0xff]
    %v153 = vld [vmem:[#allocation2 + $0x400] sm:$0xff]
    %v154 = vld [vmem:[#allocation2 + $0x408] sm:$0xff]
    %v155 = vld [vmem:[#allocation2 + $0x410] sm:$0xff]
    %v156 = vld [vmem:[#allocation2 + $0x418] sm:$0xff]
    %v157 = vld [vmem:[#allocation2 + $0x420] sm:$0xff]
    %v158 = vld [vmem:[#allocation2 + $0x428] sm:$0xff]
    %v159 = vld [vmem:[#allocation2 + $0x430] sm:$0xff]
    %v160 = vld [vmem:[#allocation2 + $0x438] sm:$0xff]
    %v161 = vld [vmem:[#allocation2 + $0x440] sm:$0xff]
    %v162 = vld [vmem:[#allocation2 + $0x448] sm:$0xff]
    %v163 = vld [vmem:[#allocation2 + $0x450] sm:$0xff]
    %v164 = vld [vmem:[#allocation2 + $0x458] sm:$0xff]
    %v165 = vld [vmem:[#allocation2 + $0x460] sm:$0xff]
    %v166 = vld [vmem:[#allocation2 + $0x468] sm:$0xff]
    %v167 = vld [vmem:[#allocation2 + $0x470] sm:$0xff]
    %v168 = vld [vmem:[#allocation2 + $0x478] sm:$0xff]
    %v169 = vld [vmem:[#allocation2 + $0x480] sm:$0xff]
    %v170 = vld [vmem:[#allocation2 + $0x488] sm:$0xff]
    %v171 = vld [vmem:[#allocation2 + $0x490] sm:$0xff]
    %v172 = vld [vmem:[#allocation2 + $0x498] sm:$0xff]
    %v173 = vld [vmem:[#allocation2 + $0x4a0] sm:$0xff]
    %v174 = vld [vmem:[#allocation2 + $0x4a8] sm:$0xff]
    %v175 = vld [vmem:[#allocation2 + $0x4b0] sm:$0xff]
    %v176 = vld [vmem:[#allocation2 + $0x4b8] sm:$0xff]
    %v177 = vld [vmem:[#allocation2 + $0x4c0] sm:$0xff]
    %v178 = vld [vmem:[#allocation2 + $0x4c8] sm:$0xff]
    %v179 = vld [vmem:[#allocation2 + $0x4d0] sm:$0xff]
    %v180 = vld [vmem:[#allocation2 + $0x4d8] sm:$0xff]
    %v181 = vld [vmem:[#allocation2 + $0x4e0] sm:$0xff]
    %v182 = vld [vmem:[#allocation2 + $0x4e8] sm:$0xff]
    %v183 = vld [vmem:[#allocation2 + $0x4f0] sm:$0xff]
    %v184 = vld [vmem:[#allocation2 + $0x4f8] sm:$0xff]
    %v185 = vld [vmem:[#allocation2 + $0x500] sm:$0xff]
    %v186 = vld [vmem:[#allocation2 + $0x508] sm:$0xff]
    %v187 = vld [vmem:[#allocation2 + $0x510] sm:$0xff]
    %v188 = vld [vmem:[#allocation2 + $0x518] sm:$0xff]
    %v189 = vld [vmem:[#allocation2 + $0x520] sm:$0xff]
    %v190 = vld [vmem:[#allocation2 + $0x528] sm:$0xff]
    %v191 = vld [vmem:[#allocation2 + $0x530] sm:$0xff]
    %v192 = vld [vmem:[#allocation2 + $0x538] sm:$0xff]
    %v193 = vld [vmem:[#allocation2 + $0x540] sm:$0xff]
    %v194 = vld [vmem:[#allocation2 + $0x548] sm:$0xff]
    %v195 = vld [vmem:[#allocation2 + $0x550] sm:$0xff]
    %v196 = vld [vmem:[#allocation2 + $0x558] sm:$0xff]
    %v197 = vld [vmem:[#allocation2 + $0x560] sm:$0xff]
    %v198 = vld [vmem:[#allocation2 + $0x568] sm:$0xff]
    %v199 = vld [vmem:[#allocation2 + $0x570] sm:$0xff]
    %v200 = vld [vmem:[#allocation2 + $0x578] sm:$0xff]
    %v201 = vld [vmem:[#allocation2 + $0x580] sm:$0xff]
    %v202 = vld [vmem:[#allocation2 + $0x588] sm:$0xff]
    %v203 = vld [vmem:[#allocation2 + $0x590] sm:$0xff]
    %v204 = vld [vmem:[#allocation2 + $0x598] sm:$0xff]
    %v205 = vld [vmem:[#allocation2 + $0x5a0] sm:$0xff]
    %v206 = vld [vmem:[#allocation2 + $0x5a8] sm:$0xff]
    %v207 = vld [vmem:[#allocation2 + $0x5b0] sm:$0xff]
    %v208 = vld [vmem:[#allocation2 + $0x5b8] sm:$0xff]
    %v209 = vld [vmem:[#allocation2 + $0x5c0] sm:$0xff]
    %v210 = vld [vmem:[#allocation2 + $0x5c8] sm:$0xff]
    %v211 = vld [vmem:[#allocation2 + $0x5d0] sm:$0xff]
    %v212 = vld [vmem:[#allocation2 + $0x5d8] sm:$0xff]
    %v213 = vld [vmem:[#allocation2 + $0x5e0] sm:$0xff]
    %v214 = vld [vmem:[#allocation2 + $0x5e8] sm:$0xff]
    %v215 = vld [vmem:[#allocation2 + $0x5f0] sm:$0xff]
    %v216 = vld [vmem:[#allocation2 + $0x5f8] sm:$0xff]
    %v217 = vld [vmem:[#allocation2 + $0x600] sm:$0xff]
    %v218 = vld [vmem:[#allocation2 + $0x608] sm:$0xff]
    %v219 = vld [vmem:[#allocation2 + $0x610] sm:$0xff]
    %v220 = vld [vmem:[#allocation2 + $0x618] sm:$0xff]
    %v221 = vld [vmem:[#allocation2 + $0x620] sm:$0xff]
    %v222 = vld [vmem:[#allocation2 + $0x628] sm:$0xff]
    %v223 = vld [vmem:[#allocation2 + $0x630] sm:$0xff]
    %v224 = vld [vmem:[#allocation2 + $0x638] sm:$0xff]
    %v225 = vld [vmem:[#allocation2 + $0x640] sm:$0xff]
    %v226 = vld [vmem:[#allocation2 + $0x648] sm:$0xff]
    %v227 = vld [vmem:[#allocation2 + $0x650] sm:$0xff]
    %v228 = vld [vmem:[#allocation2 + $0x658] sm:$0xff]
    %v229 = vld [vmem:[#allocation2 + $0x660] sm:$0xff]
    %v230 = vld [vmem:[#allocation2 + $0x668] sm:$0xff]
    %v231 = vld [vmem:[#allocation2 + $0x670] sm:$0xff]
    %v232 = vld [vmem:[#allocation2 + $0x678] sm:$0xff]
    %v233 = vld [vmem:[#allocation2 + $0x680] sm:$0xff]
    %v234 = vld [vmem:[#allocation2 + $0x688] sm:$0xff]
    %v235 = vld [vmem:[#allocation2 + $0x690] sm:$0xff]
    %v236 = vld [vmem:[#allocation2 + $0x698] sm:$0xff]
    %v237 = vld [vmem:[#allocation2 + $0x6a0] sm:$0xff]
    %v238 = vld [vmem:[#allocation2 + $0x6a8] sm:$0xff]
    %v239 = vld [vmem:[#allocation2 + $0x6b0] sm:$0xff]
    %v240 = vld [vmem:[#allocation2 + $0x6b8] sm:$0xff]
    %v241 = vld [vmem:[#allocation2 + $0x6c0] sm:$0xff]
    %v242 = vld [vmem:[#allocation2 + $0x6c8] sm:$0xff]
    %v243 = vld [vmem:[#allocation2 + $0x6d0] sm:$0xff]
    %v244 = vld [vmem:[#allocation2 + $0x6d8] sm:$0xff]
    %v245 = vld [vmem:[#allocation2 + $0x6e0] sm:$0xff]
    %v246 = vld [vmem:[#allocation2 + $0x6e8] sm:$0xff]
    %v247 = vld [vmem:[#allocation2 + $0x6f0] sm:$0xff]
    %v248 = vld [vmem:[#allocation2 + $0x6f8] sm:$0xff]
    %v249 = vld [vmem:[#allocation2 + $0x700] sm:$0xff]
    %v250 = vld [vmem:[#allocation2 + $0x708] sm:$0xff]
    %v251 = vld [vmem:[#allocation2 + $0x710] sm:$0xff]
    %v252 = vld [vmem:[#allocation2 + $0x718] sm:$0xff]
    %v253 = vld [vmem:[#allocation2 + $0x720] sm:$0xff]
    %v254 = vld [vmem:[#allocation2 + $0x728] sm:$0xff]
    %v255 = vld [vmem:[#allocation2 + $0x730] sm:$0xff]
    %v256 = vld [vmem:[#allocation2 + $0x738] sm:$0xff]
    %v257 = vld [vmem:[#allocation2 + $0x740] sm:$0xff]
    %v258 = vld [vmem:[#allocation2 + $0x748] sm:$0xff]
    %v259 = vld [vmem:[#allocation2 + $0x750] sm:$0xff]
    %v260 = vld [vmem:[#allocation2 + $0x758] sm:$0xff]
    %v261 = vld [vmem:[#allocation2 + $0x760] sm:$0xff]
    %v262 = vld [vmem:[#allocation2 + $0x768] sm:$0xff]
    %v263 = vld [vmem:[#allocation2 + $0x770] sm:$0xff]
    %v264 = vld [vmem:[#allocation2 + $0x778] sm:$0xff]
    %v265 = vld [vmem:[#allocation2 + $0x780] sm:$0x1f]
    %v266 = vld [vmem:[#allocation2 + $0x788] sm:$0x1f]
    %v267 = vld [vmem:[#allocation2 + $0x790] sm:$0x1f]
    %v268 = vld [vmem:[#allocation2 + $0x798] sm:$0x1f]
    %v269 = vld [vmem:[#allocation2 + $0x7a0] sm:$0x1f]
    %v270 = vld [vmem:[#allocation2 + $0x7a8] sm:$0x1f]
    %v271 = vld [vmem:[#allocation2 + $0x7b0] sm:$0x1f]
    %v272 = vld [vmem:[#allocation2 + $0x7b8] sm:$0x1f]
    %v273 = vld [vmem:[#allocation2 + $0x7c0] sm:$0x1f]
    %v274 = vld [vmem:[#allocation2 + $0x7c8] sm:$0x1f]
    %v275 = vld [vmem:[#allocation2 + $0x7d0] sm:$0x1f]
    %v276 = vld [vmem:[#allocation2 + $0x7d8] sm:$0x1f]
    %v277 = vld [vmem:[#allocation2 + $0x7e0] sm:$0x1f]
    %v278 = vld [vmem:[#allocation2 + $0x7e8] sm:$0x1f]
    %v279 = vld [vmem:[#allocation2 + $0x7f0] sm:$0x1f]
    %v280 = vld [vmem:[#allocation2 + $0x7f8] sm:$0x1f]
    %v281 = vmul.f32 %v25, 1.442695
    %v282 = vpow.pop %v281
    %v283 = vmul.f32 %v26, 1.442695
    %v284 = vpow.pop %v283
    %v285 = vmul.f32 %v27, 1.442695
    %v286 = vpow.pop %v285
    %v287 = vmul.f32 %v28, 1.442695
    %v288 = vpow.pop %v287
    %v289 = vmul.f32 %v29, 1.442695
    %v290 = vpow.pop %v289
    %v291 = vmul.f32 %v30, 1.442695
    %v292 = vpow.pop %v291
    %v293 = vmul.f32 %v31, 1.442695
    %v294 = vpow.pop %v293
    %v295 = vmul.f32 %v32, 1.442695
    %v296 = vpow.pop %v295
    %v297 = vmul.f32 %v33, 1.442695
    %v298 = vpow.pop %v297
    %v299 = vmul.f32 %v34, 1.442695
    %v300 = vpow.pop %v299
    %v301 = vmul.f32 %v35, 1.442695
    %v302 = vpow.pop %v301
    %v303 = vmul.f32 %v36, 1.442695
    %v304 = vpow.pop %v303
    %v305 = vmul.f32 %v37, 1.442695
    %v306 = vpow.pop %v305
    %v307 = vmul.f32 %v38, 1.442695
    %v308 = vpow.pop %v307
    %v309 = vmul.f32 %v39, 1.442695
    %v310 = vpow.pop %v309
    %v311 = vmul.f32 %v40, 1.442695
    %v312 = vpow.pop %v311
    %v313 = vmul.f32 %v41, 1.442695
    %v314 = vpow.pop %v313
    %v315 = vmul.f32 %v42, 1.442695
    %v316 = vpow.pop %v315
    %v317 = vmul.f32 %v43, 1.442695
    %v318 = vpow.pop %v317
    %v319 = vmul.f32 %v44, 1.442695
    %v320 = vpow.pop %v319
    %v321 = vmul.f32 %v45, 1.442695
    %v322 = vpow.pop %v321
    %v323 = vmul.f32 %v46, 1.442695
    %v324 = vpow.pop %v323
    %v325 = vmul.f32 %v47, 1.442695
    %v326 = vpow.pop %v325
    %v327 = vmul.f32 %v48, 1.442695
    %v328 = vpow.pop %v327
    %v329 = vmul.f32 %v49, 1.442695
    %v330 = vpow.pop %v329
    %v331 = vmul.f32 %v50, 1.442695
    %v332 = vpow.pop %v331
    %v333 = vmul.f32 %v51, 1.442695
    %v334 = vpow.pop %v333
    %v335 = vmul.f32 %v52, 1.442695
    %v336 = vpow.pop %v335
    %v337 = vmul.f32 %v53, 1.442695
    %v338 = vpow.pop %v337
    %v339 = vmul.f32 %v54, 1.442695
    %v340 = vpow.pop %v339
    %v341 = vmul.f32 %v55, 1.442695
    %v342 = vpow.pop %v341
    %v343 = vmul.f32 %v56, 1.442695
    %v344 = vpow.pop %v343
    %v345 = vmul.f32 %v57, 1.442695
    %v346 = vpow.pop %v345
    %v347 = vmul.f32 %v58, 1.442695
    %v348 = vpow.pop %v347
    %v349 = vmul.f32 %v59, 1.442695
    %v350 = vpow.pop %v349
    %v351 = vmul.f32 %v60, 1.442695
    %v352 = vpow.pop %v351
    %v353 = vmul.f32 %v61, 1.442695
    %v354 = vpow.pop %v353
    %v355 = vmul.f32 %v62, 1.442695
    %v356 = vpow.pop %v355
    %v357 = vmul.f32 %v63, 1.442695
    %v358 = vpow.pop %v357
    %v359 = vmul.f32 %v64, 1.442695
    %v360 = vpow.pop %v359
    %v361 = vmul.f32 %v65, 1.442695
    %v362 = vpow.pop %v361
    %v363 = vmul.f32 %v66, 1.442695
    %v364 = vpow.pop %v363
    %v365 = vmul.f32 %v67, 1.442695
    %v366 = vpow.pop %v365
    %v367 = vmul.f32 %v68, 1.442695
    %v368 = vpow.pop %v367
    %v369 = vmul.f32 %v69, 1.442695
    %v370 = vpow.pop %v369
    %v371 = vmul.f32 %v70, 1.442695
    %v372 = vpow.pop %v371
    %v373 = vmul.f32 %v71, 1.442695
    %v374 = vpow.pop %v373
    %v375 = vmul.f32 %v72, 1.442695
    %v376 = vpow.pop %v375
    %v377 = vmul.f32 %v73, 1.442695
    %v378 = vpow.pop %v377
    %v379 = vmul.f32 %v74, 1.442695
    %v380 = vpow.pop %v379
    %v381 = vmul.f32 %v75, 1.442695
    %v382 = vpow.pop %v381
    %v383 = vmul.f32 %v76, 1.442695
    %v384 = vpow.pop %v383
    %v385 = vmul.f32 %v77, 1.442695
    %v386 = vpow.pop %v385
    %v387 = vmul.f32 %v78, 1.442695
    %v388 = vpow.pop %v387
    %v389 = vmul.f32 %v79, 1.442695
    %v390 = vpow.pop %v389
    %v391 = vmul.f32 %v80, 1.442695
    %v392 = vpow.pop %v391
    %v393 = vmul.f32 %v81, 1.442695
    %v394 = vpow.pop %v393
    %v395 = vmul.f32 %v82, 1.442695
    %v396 = vpow.pop %v395
    %v397 = vmul.f32 %v83, 1.442695
    %v398 = vpow.pop %v397
    %v399 = vmul.f32 %v84, 1.442695
    %v400 = vpow.pop %v399
    %v401 = vmul.f32 %v85, 1.442695
    %v402 = vpow.pop %v401
    %v403 = vmul.f32 %v86, 1.442695
    %v404 = vpow.pop %v403
    %v405 = vmul.f32 %v87, 1.442695
    %v406 = vpow.pop %v405
    %v407 = vmul.f32 %v88, 1.442695
    %v408 = vpow.pop %v407
    %v409 = vmul.f32 %v89, 1.442695
    %v410 = vpow.pop %v409
    %v411 = vmul.f32 %v90, 1.442695
    %v412 = vpow.pop %v411
    %v413 = vmul.f32 %v91, 1.442695
    %v414 = vpow.pop %v413
    %v415 = vmul.f32 %v92, 1.442695
    %v416 = vpow.pop %v415
    %v417 = vmul.f32 %v93, 1.442695
    %v418 = vpow.pop %v417
    %v419 = vmul.f32 %v94, 1.442695
    %v420 = vpow.pop %v419
    %v421 = vmul.f32 %v95, 1.442695
    %v422 = vpow.pop %v421
    %v423 = vmul.f32 %v96, 1.442695
    %v424 = vpow.pop %v423
    %v425 = vmul.f32 %v97, 1.442695
    %v426 = vpow.pop %v425
    %v427 = vmul.f32 %v98, 1.442695
    %v428 = vpow.pop %v427
    %v429 = vmul.f32 %v99, 1.442695
    %v430 = vpow.pop %v429
    %v431 = vmul.f32 %v100, 1.442695
    %v432 = vpow.pop %v431
    %v433 = vmul.f32 %v101, 1.442695
    %v434 = vpow.pop %v433
    %v435 = vmul.f32 %v102, 1.442695
    %v436 = vpow.pop %v435
    %v437 = vmul.f32 %v103, 1.442695
    %v438 = vpow.pop %v437
    %v439 = vmul.f32 %v104, 1.442695
    %v440 = vpow.pop %v439
    %v441 = vmul.f32 %v105, 1.442695
    %v442 = vpow.pop %v441
    %v443 = vmul.f32 %v106, 1.442695
    %v444 = vpow.pop %v443
    %v445 = vmul.f32 %v107, 1.442695
    %v446 = vpow.pop %v445
    %v447 = vmul.f32 %v108, 1.442695
    %v448 = vpow.pop %v447
    %v449 = vmul.f32 %v109, 1.442695
    %v450 = vpow.pop %v449
    %v451 = vmul.f32 %v110, 1.442695
    %v452 = vpow.pop %v451
    %v453 = vmul.f32 %v111, 1.442695
    %v454 = vpow.pop %v453
    %v455 = vmul.f32 %v112, 1.442695
    %v456 = vpow.pop %v455
    %v457 = vmul.f32 %v113, 1.442695
    %v458 = vpow.pop %v457
    %v459 = vmul.f32 %v114, 1.442695
    %v460 = vpow.pop %v459
    %v461 = vmul.f32 %v115, 1.442695
    %v462 = vpow.pop %v461
    %v463 = vmul.f32 %v116, 1.442695
    %v464 = vpow.pop %v463
    %v465 = vmul.f32 %v117, 1.442695
    %v466 = vpow.pop %v465
    %v467 = vmul.f32 %v118, 1.442695
    %v468 = vpow.pop %v467
    %v469 = vmul.f32 %v119, 1.442695
    %v470 = vpow.pop %v469
    %v471 = vmul.f32 %v120, 1.442695
    %v472 = vpow.pop %v471
    %v473 = vmul.f32 %v121, 1.442695
    %v474 = vpow.pop %v473
    %v475 = vmul.f32 %v122, 1.442695
    %v476 = vpow.pop %v475
    %v477 = vmul.f32 %v123, 1.442695
    %v478 = vpow.pop %v477
    %v479 = vmul.f32 %v124, 1.442695
    %v480 = vpow.pop %v479
    %v481 = vmul.f32 %v125, 1.442695
    %v482 = vpow.pop %v481
    %v483 = vmul.f32 %v126, 1.442695
    %v484 = vpow.pop %v483
    %v485 = vmul.f32 %v127, 1.442695
    %v486 = vpow.pop %v485
    %v487 = vmul.f32 %v128, 1.442695
    %v488 = vpow.pop %v487
    %v489 = vmul.f32 %v129, 1.442695
    %v490 = vpow.pop %v489
    %v491 = vmul.f32 %v130, 1.442695
    %v492 = vpow.pop %v491
    %v493 = vmul.f32 %v131, 1.442695
    %v494 = vpow.pop %v493
    %v495 = vmul.f32 %v132, 1.442695
    %v496 = vpow.pop %v495
    %v497 = vmul.f32 %v133, 1.442695
    %v498 = vpow.pop %v497
    %v499 = vmul.f32 %v134, 1.442695
    %v500 = vpow.pop %v499
    %v501 = vmul.f32 %v135, 1.442695
    %v502 = vpow.pop %v501
    %v503 = vmul.f32 %v136, 1.442695
    %v504 = vpow.pop %v503
    %v505 = vmul.f32 %v137, 1.442695
    %v506 = vpow.pop %v505
    %v507 = vmul.f32 %v138, 1.442695
    %v508 = vpow.pop %v507
    %v509 = vmul.f32 %v139, 1.442695
    %v510 = vpow.pop %v509
    %v511 = vmul.f32 %v140, 1.442695
    %v512 = vpow.pop %v511
    %v513 = vmul.f32 %v141, 1.442695
    %v514 = vpow.pop %v513
    %v515 = vmul.f32 %v142, 1.442695
    %v516 = vpow.pop %v515
    %v517 = vmul.f32 %v143, 1.442695
    %v518 = vpow.pop %v517
    %v519 = vmul.f32 %v144, 1.442695
    %v520 = vpow.pop %v519
    %v521 = vmul.f32 %v145, 1.442695
    %v522 = vpow.pop %v521
    %v523 = vmul.f32 %v146, 1.442695
    %v524 = vpow.pop %v523
    %v525 = vmul.f32 %v147, 1.442695
    %v526 = vpow.pop %v525
    %v527 = vmul.f32 %v148, 1.442695
    %v528 = vpow.pop %v527
    %v529 = vmul.f32 %v149, 1.442695
    %v530 = vpow.pop %v529
    %v531 = vmul.f32 %v150, 1.442695
    %v532 = vpow.pop %v531
    %v533 = vmul.f32 %v151, 1.442695
    %v534 = vpow.pop %v533
    %v535 = vmul.f32 %v152, 1.442695
    %v536 = vpow.pop %v535
    %v537 = vmul.f32 %v153, 1.442695
    %v538 = vpow.pop %v537
    %v539 = vmul.f32 %v154, 1.442695
    %v540 = vpow.pop %v539
    %v541 = vmul.f32 %v155, 1.442695
    %v542 = vpow.pop %v541
    %v543 = vmul.f32 %v156, 1.442695
    %v544 = vpow.pop %v543
    %v545 = vmul.f32 %v157, 1.442695
    %v546 = vpow.pop %v545
    %v547 = vmul.f32 %v158, 1.442695
    %v548 = vpow.pop %v547
    %v549 = vmul.f32 %v159, 1.442695
    %v550 = vpow.pop %v549
    %v551 = vmul.f32 %v160, 1.442695
    %v552 = vpow.pop %v551
    %v553 = vmul.f32 %v161, 1.442695
    %v554 = vpow.pop %v553
    %v555 = vmul.f32 %v162, 1.442695
    %v556 = vpow.pop %v555
    %v557 = vmul.f32 %v163, 1.442695
    %v558 = vpow.pop %v557
    %v559 = vmul.f32 %v164, 1.442695
    %v560 = vpow.pop %v559
    %v561 = vmul.f32 %v165, 1.442695
    %v562 = vpow.pop %v561
    %v563 = vmul.f32 %v166, 1.442695
    %v564 = vpow.pop %v563
    %v565 = vmul.f32 %v167, 1.442695
    %v566 = vpow.pop %v565
    %v567 = vmul.f32 %v168, 1.442695
    %v568 = vpow.pop %v567
    %v569 = vmul.f32 %v169, 1.442695
    %v570 = vpow.pop %v569
    %v571 = vmul.f32 %v170, 1.442695
    %v572 = vpow.pop %v571
    %v573 = vmul.f32 %v171, 1.442695
    %v574 = vpow.pop %v573
    %v575 = vmul.f32 %v172, 1.442695
    %v576 = vpow.pop %v575
    %v577 = vmul.f32 %v173, 1.442695
    %v578 = vpow.pop %v577
    %v579 = vmul.f32 %v174, 1.442695
    %v580 = vpow.pop %v579
    %v581 = vmul.f32 %v175, 1.442695
    %v582 = vpow.pop %v581
    %v583 = vmul.f32 %v176, 1.442695
    %v584 = vpow.pop %v583
    %v585 = vmul.f32 %v177, 1.442695
    %v586 = vpow.pop %v585
    %v587 = vmul.f32 %v178, 1.442695
    %v588 = vpow.pop %v587
    %v589 = vmul.f32 %v179, 1.442695
    %v590 = vpow.pop %v589
    %v591 = vmul.f32 %v180, 1.442695
    %v592 = vpow.pop %v591
    %v593 = vmul.f32 %v181, 1.442695
    %v594 = vpow.pop %v593
    %v595 = vmul.f32 %v182, 1.442695
    %v596 = vpow.pop %v595
    %v597 = vmul.f32 %v183, 1.442695
    %v598 = vpow.pop %v597
    %v599 = vmul.f32 %v184, 1.442695
    %v600 = vpow.pop %v599
    %v601 = vmul.f32 %v185, 1.442695
    %v602 = vpow.pop %v601
    %v603 = vmul.f32 %v186, 1.442695
    %v604 = vpow.pop %v603
    %v605 = vmul.f32 %v187, 1.442695
    %v606 = vpow.pop %v605
    %v607 = vmul.f32 %v188, 1.442695
    %v608 = vpow.pop %v607
    %v609 = vmul.f32 %v189, 1.442695
    %v610 = vpow.pop %v609
    %v611 = vmul.f32 %v190, 1.442695
    %v612 = vpow.pop %v611
    %v613 = vmul.f32 %v191, 1.442695
    %v614 = vpow.pop %v613
    %v615 = vmul.f32 %v192, 1.442695
    %v616 = vpow.pop %v615
    %v617 = vmul.f32 %v193, 1.442695
    %v618 = vpow.pop %v617
    %v619 = vmul.f32 %v194, 1.442695
    %v620 = vpow.pop %v619
    %v621 = vmul.f32 %v195, 1.442695
    %v622 = vpow.pop %v621
    %v623 = vmul.f32 %v196, 1.442695
    %v624 = vpow.pop %v623
    %v625 = vmul.f32 %v197, 1.442695
    %v626 = vpow.pop %v625
    %v627 = vmul.f32 %v198, 1.442695
    %v628 = vpow.pop %v627
    %v629 = vmul.f32 %v199, 1.442695
    %v630 = vpow.pop %v629
    %v631 = vmul.f32 %v200, 1.442695
    %v632 = vpow.pop %v631
    %v633 = vmul.f32 %v201, 1.442695
    %v634 = vpow.pop %v633
    %v635 = vmul.f32 %v202, 1.442695
    %v636 = vpow.pop %v635
    %v637 = vmul.f32 %v203, 1.442695
    %v638 = vpow.pop %v637
    %v639 = vmul.f32 %v204, 1.442695
    %v640 = vpow.pop %v639
    %v641 = vmul.f32 %v205, 1.442695
    %v642 = vpow.pop %v641
    %v643 = vmul.f32 %v206, 1.442695
    %v644 = vpow.pop %v643
    %v645 = vmul.f32 %v207, 1.442695
    %v646 = vpow.pop %v645
    %v647 = vmul.f32 %v208, 1.442695
    %v648 = vpow.pop %v647
    %v649 = vmul.f32 %v209, 1.442695
    %v650 = vpow.pop %v649
    %v651 = vmul.f32 %v210, 1.442695
    %v652 = vpow.pop %v651
    %v653 = vmul.f32 %v211, 1.442695
    %v654 = vpow.pop %v653
    %v655 = vmul.f32 %v212, 1.442695
    %v656 = vpow.pop %v655
    %v657 = vmul.f32 %v213, 1.442695
    %v658 = vpow.pop %v657
    %v659 = vmul.f32 %v214, 1.442695
    %v660 = vpow.pop %v659
    %v661 = vmul.f32 %v215, 1.442695
    %v662 = vpow.pop %v661
    %v663 = vmul.f32 %v216, 1.442695
    %v664 = vpow.pop %v663
    %v665 = vmul.f32 %v217, 1.442695
    %v666 = vpow.pop %v665
    %v667 = vmul.f32 %v218, 1.442695
    %v668 = vpow.pop %v667
    %v669 = vmul.f32 %v219, 1.442695
    %v670 = vpow.pop %v669
    %v671 = vmul.f32 %v220, 1.442695
    %v672 = vpow.pop %v671
    %v673 = vmul.f32 %v221, 1.442695
    %v674 = vpow.pop %v673
    %v675 = vmul.f32 %v222, 1.442695
    %v676 = vpow.pop %v675
    %v677 = vmul.f32 %v223, 1.442695
    %v678 = vpow.pop %v677
    %v679 = vmul.f32 %v224, 1.442695
    %v680 = vpow.pop %v679
    %v681 = vmul.f32 %v225, 1.442695
    %v682 = vpow.pop %v681
    %v683 = vmul.f32 %v226, 1.442695
    %v684 = vpow.pop %v683
    %v685 = vmul.f32 %v227, 1.442695
    %v686 = vpow.pop %v685
    %v687 = vmul.f32 %v228, 1.442695
    %v688 = vpow.pop %v687
    %v689 = vmul.f32 %v229, 1.442695
    %v690 = vpow.pop %v689
    %v691 = vmul.f32 %v230, 1.442695
    %v692 = vpow.pop %v691
    %v693 = vmul.f32 %v231, 1.442695
    %v694 = vpow.pop %v693
    %v695 = vmul.f32 %v232, 1.442695
    %v696 = vpow.pop %v695
    %v697 = vmul.f32 %v233, 1.442695
    %v698 = vpow.pop %v697
    %v699 = vmul.f32 %v234, 1.442695
    %v700 = vpow.pop %v699
    %v701 = vmul.f32 %v235, 1.442695
    %v702 = vpow.pop %v701
    %v703 = vmul.f32 %v236, 1.442695
    %v704 = vpow.pop %v703
    %v705 = vmul.f32 %v237, 1.442695
    %v706 = vpow.pop %v705
    %v707 = vmul.f32 %v238, 1.442695
    %v708 = vpow.pop %v707
    %v709 = vmul.f32 %v239, 1.442695
    %v710 = vpow.pop %v709
    %v711 = vmul.f32 %v240, 1.442695
    %v712 = vpow.pop %v711
    %v713 = vmul.f32 %v241, 1.442695
    %v714 = vpow.pop %v713
    %v715 = vmul.f32 %v242, 1.442695
    %v716 = vpow.pop %v715
    %v717 = vmul.f32 %v243, 1.442695
    %v718 = vpow.pop %v717
    %v719 = vmul.f32 %v244, 1.442695
    %v720 = vpow.pop %v719
    %v721 = vmul.f32 %v245, 1.442695
    %v722 = vpow.pop %v721
    %v723 = vmul.f32 %v246, 1.442695
    %v724 = vpow.pop %v723
    %v725 = vmul.f32 %v247, 1.442695
    %v726 = vpow.pop %v725
    %v727 = vmul.f32 %v248, 1.442695
    %v728 = vpow.pop %v727
    %v729 = vmul.f32 %v249, 1.442695
    %v730 = vpow.pop %v729
    %v731 = vmul.f32 %v250, 1.442695
    %v732 = vpow.pop %v731
    %v733 = vmul.f32 %v251, 1.442695
    %v734 = vpow.pop %v733
    %v735 = vmul.f32 %v252, 1.442695
    %v736 = vpow.pop %v735
    %v737 = vmul.f32 %v253, 1.442695
    %v738 = vpow.pop %v737
    %v739 = vmul.f32 %v254, 1.442695
    %v740 = vpow.pop %v739
    %v741 = vmul.f32 %v255, 1.442695
    %v742 = vpow.pop %v741
    %v743 = vmul.f32 %v256, 1.442695
    %v744 = vpow.pop %v743
    %v745 = vmul.f32 %v257, 1.442695
    %v746 = vpow.pop %v745
    %v747 = vmul.f32 %v258, 1.442695
    %v748 = vpow.pop %v747
    %v749 = vmul.f32 %v259, 1.442695
    %v750 = vpow.pop %v749
    %v751 = vmul.f32 %v260, 1.442695
    %v752 = vpow.pop %v751
    %v753 = vmul.f32 %v261, 1.442695
    %v754 = vpow.pop %v753
    %v755 = vmul.f32 %v262, 1.442695
    %v756 = vpow.pop %v755
    %v757 = vmul.f32 %v263, 1.442695
    %v758 = vpow.pop %v757
    %v759 = vmul.f32 %v264, 1.442695
    %v760 = vpow.pop %v759
    %v761 = vmul.f32 %v265, 1.442695
    %v762 = vpow.pop %v761
    %v763 = vmul.f32 %v266, 1.442695
    %v764 = vpow.pop %v763
    %v765 = vmul.f32 %v267, 1.442695
    %v766 = vpow.pop %v765
    %v767 = vmul.f32 %v268, 1.442695
    %v768 = vpow.pop %v767
    %v769 = vmul.f32 %v269, 1.442695
    %v770 = vpow.pop %v769
    %v771 = vmul.f32 %v270, 1.442695
    %v772 = vpow.pop %v771
    %v773 = vmul.f32 %v271, 1.442695
    %v774 = vpow.pop %v773
    %v775 = vmul.f32 %v272, 1.442695
    %v776 = vpow.pop %v775
    %v777 = vmul.f32 %v273, 1.442695
    %v778 = vpow.pop %v777
    %v779 = vmul.f32 %v274, 1.442695
    %v780 = vpow.pop %v779
    %v781 = vmul.f32 %v275, 1.442695
    %v782 = vpow.pop %v781
    %v783 = vmul.f32 %v276, 1.442695
    %v784 = vpow.pop %v783
    %v785 = vmul.f32 %v277, 1.442695
    %v786 = vpow.pop %v785
    %v787 = vmul.f32 %v278, 1.442695
    %v788 = vpow.pop %v787
    %v789 = vmul.f32 %v279, 1.442695
    %v790 = vpow.pop %v789
    %v791 = vmul.f32 %v280, 1.442695
    %v792 = vpow.pop %v791
    %v793 = vadd.f32 %v282, 1e-05
    %v794 = vadd.f32 %v284, 1e-05
    %v795 = vadd.f32 %v286, 1e-05
    %v796 = vadd.f32 %v288, 1e-05
    %v797 = vadd.f32 %v290, 1e-05
    %v798 = vadd.f32 %v292, 1e-05
    %v799 = vadd.f32 %v294, 1e-05
    %v800 = vadd.f32 %v296, 1e-05
    %v801 = vadd.f32 %v298, 1e-05
    %v802 = vadd.f32 %v300, 1e-05
    %v803 = vadd.f32 %v302, 1e-05
    %v804 = vadd.f32 %v304, 1e-05
    %v805 = vadd.f32 %v306, 1e-05
    %v806 = vadd.f32 %v308, 1e-05
    %v807 = vadd.f32 %v310, 1e-05
    %v808 = vadd.f32 %v312, 1e-05
    %v809 = vadd.f32 %v314, 1e-05
    %v810 = vadd.f32 %v316, 1e-05
    %v811 = vadd.f32 %v318, 1e-05
    %v812 = vadd.f32 %v320, 1e-05
    %v813 = vadd.f32 %v322, 1e-05
    %v814 = vadd.f32 %v324, 1e-05
    %v815 = vadd.f32 %v326, 1e-05
    %v816 = vadd.f32 %v328, 1e-05
    %v817 = vadd.f32 %v330, 1e-05
    %v818 = vadd.f32 %v332, 1e-05
    %v819 = vadd.f32 %v334, 1e-05
    %v820 = vadd.f32 %v336, 1e-05
    %v821 = vadd.f32 %v338, 1e-05
    %v822 = vadd.f32 %v340, 1e-05
    %v823 = vadd.f32 %v342, 1e-05
    %v824 = vadd.f32 %v344, 1e-05
    %v825 = vadd.f32 %v346, 1e-05
    %v826 = vadd.f32 %v348, 1e-05
    %v827 = vadd.f32 %v350, 1e-05
    %v828 = vadd.f32 %v352, 1e-05
    %v829 = vadd.f32 %v354, 1e-05
    %v830 = vadd.f32 %v356, 1e-05
    %v831 = vadd.f32 %v358, 1e-05
    %v832 = vadd.f32 %v360, 1e-05
    %v833 = vadd.f32 %v362, 1e-05
    %v834 = vadd.f32 %v364, 1e-05
    %v835 = vadd.f32 %v366, 1e-05
    %v836 = vadd.f32 %v368, 1e-05
    %v837 = vadd.f32 %v370, 1e-05
    %v838 = vadd.f32 %v372, 1e-05
    %v839 = vadd.f32 %v374, 1e-05
    %v840 = vadd.f32 %v376, 1e-05
    %v841 = vadd.f32 %v378, 1e-05
    %v842 = vadd.f32 %v380, 1e-05
    %v843 = vadd.f32 %v382, 1e-05
    %v844 = vadd.f32 %v384, 1e-05
    %v845 = vadd.f32 %v386, 1e-05
    %v846 = vadd.f32 %v388, 1e-05
    %v847 = vadd.f32 %v390, 1e-05
    %v848 = vadd.f32 %v392, 1e-05
    %v849 = vadd.f32 %v394, 1e-05
    %v850 = vadd.f32 %v396, 1e-05
    %v851 = vadd.f32 %v398, 1e-05
    %v852 = vadd.f32 %v400, 1e-05
    %v853 = vadd.f32 %v402, 1e-05
    %v854 = vadd.f32 %v404, 1e-05
    %v855 = vadd.f32 %v406, 1e-05
    %v856 = vadd.f32 %v408, 1e-05
    %v857 = vadd.f32 %v410, 1e-05
    %v858 = vadd.f32 %v412, 1e-05
    %v859 = vadd.f32 %v414, 1e-05
    %v860 = vadd.f32 %v416, 1e-05
    %v861 = vadd.f32 %v418, 1e-05
    %v862 = vadd.f32 %v420, 1e-05
    %v863 = vadd.f32 %v422, 1e-05
    %v864 = vadd.f32 %v424, 1e-05
    %v865 = vadd.f32 %v426, 1e-05
    %v866 = vadd.f32 %v428, 1e-05
    %v867 = vadd.f32 %v430, 1e-05
    %v868 = vadd.f32 %v432, 1e-05
    %v869 = vadd.f32 %v434, 1e-05
    %v870 = vadd.f32 %v436, 1e-05
    %v871 = vadd.f32 %v438, 1e-05
    %v872 = vadd.f32 %v440, 1e-05
    %v873 = vadd.f32 %v442, 1e-05
    %v874 = vadd.f32 %v444, 1e-05
    %v875 = vadd.f32 %v446, 1e-05
    %v876 = vadd.f32 %v448, 1e-05
    %v877 = vadd.f32 %v450, 1e-05
    %v878 = vadd.f32 %v452, 1e-05
    %v879 = vadd.f32 %v454, 1e-05
    %v880 = vadd.f32 %v456, 1e-05
    %v881 = vadd.f32 %v458, 1e-05
    %v882 = vadd.f32 %v460, 1e-05
    %v883 = vadd.f32 %v462, 1e-05
    %v884 = vadd.f32 %v464, 1e-05
    %v885 = vadd.f32 %v466, 1e-05
    %v886 = vadd.f32 %v468, 1e-05
    %v887 = vadd.f32 %v470, 1e-05
    %v888 = vadd.f32 %v472, 1e-05
    %v889 = vadd.f32 %v474, 1e-05
    %v890 = vadd.f32 %v476, 1e-05
    %v891 = vadd.f32 %v478, 1e-05
    %v892 = vadd.f32 %v480, 1e-05
    %v893 = vadd.f32 %v482, 1e-05
    %v894 = vadd.f32 %v484, 1e-05
    %v895 = vadd.f32 %v486, 1e-05
    %v896 = vadd.f32 %v488, 1e-05
    %v897 = vadd.f32 %v490, 1e-05
    %v898 = vadd.f32 %v492, 1e-05
    %v899 = vadd.f32 %v494, 1e-05
    %v900 = vadd.f32 %v496, 1e-05
    %v901 = vadd.f32 %v498, 1e-05
    %v902 = vadd.f32 %v500, 1e-05
    %v903 = vadd.f32 %v502, 1e-05
    %v904 = vadd.f32 %v504, 1e-05
    %v905 = vadd.f32 %v506, 1e-05
    %v906 = vadd.f32 %v508, 1e-05
    %v907 = vadd.f32 %v510, 1e-05
    %v908 = vadd.f32 %v512, 1e-05
    %v909 = vadd.f32 %v514, 1e-05
    %v910 = vadd.f32 %v516, 1e-05
    %v911 = vadd.f32 %v518, 1e-05
    %v912 = vadd.f32 %v520, 1e-05
    %v913 = vadd.f32 %v522, 1e-05
    %v914 = vadd.f32 %v524, 1e-05
    %v915 = vadd.f32 %v526, 1e-05
    %v916 = vadd.f32 %v528, 1e-05
    %v917 = vadd.f32 %v530, 1e-05
    %v918 = vadd.f32 %v532, 1e-05
    %v919 = vadd.f32 %v534, 1e-05
    %v920 = vadd.f32 %v536, 1e-05
    %v921 = vadd.f32 %v538, 1e-05
    %v922 = vadd.f32 %v540, 1e-05
    %v923 = vadd.f32 %v542, 1e-05
    %v924 = vadd.f32 %v544, 1e-05
    %v925 = vadd.f32 %v546, 1e-05
    %v926 = vadd.f32 %v548, 1e-05
    %v927 = vadd.f32 %v550, 1e-05
    %v928 = vadd.f32 %v552, 1e-05
    %v929 = vadd.f32 %v554, 1e-05
    %v930 = vadd.f32 %v556, 1e-05
    %v931 = vadd.f32 %v558, 1e-05
    %v932 = vadd.f32 %v560, 1e-05
    %v933 = vadd.f32 %v562, 1e-05
    %v934 = vadd.f32 %v564, 1e-05
    %v935 = vadd.f32 %v566, 1e-05
    %v936 = vadd.f32 %v568, 1e-05
    %v937 = vadd.f32 %v570, 1e-05
    %v938 = vadd.f32 %v572, 1e-05
    %v939 = vadd.f32 %v574, 1e-05
    %v940 = vadd.f32 %v576, 1e-05
    %v941 = vadd.f32 %v578, 1e-05
    %v942 = vadd.f32 %v580, 1e-05
    %v943 = vadd.f32 %v582, 1e-05
    %v944 = vadd.f32 %v584, 1e-05
    %v945 = vadd.f32 %v586, 1e-05
    %v946 = vadd.f32 %v588, 1e-05
    %v947 = vadd.f32 %v590, 1e-05
    %v948 = vadd.f32 %v592, 1e-05
    %v949 = vadd.f32 %v594, 1e-05
    %v950 = vadd.f32 %v596, 1e-05
    %v951 = vadd.f32 %v598, 1e-05
    %v952 = vadd.f32 %v600, 1e-05
    %v953 = vadd.f32 %v602, 1e-05
    %v954 = vadd.f32 %v604, 1e-05
    %v955 = vadd.f32 %v606, 1e-05
    %v956 = vadd.f32 %v608, 1e-05
    %v957 = vadd.f32 %v610, 1e-05
    %v958 = vadd.f32 %v612, 1e-05
    %v959 = vadd.f32 %v614, 1e-05
    %v960 = vadd.f32 %v616, 1e-05
    %v961 = vadd.f32 %v618, 1e-05
    %v962 = vadd.f32 %v620, 1e-05
    %v963 = vadd.f32 %v622, 1e-05
    %v964 = vadd.f32 %v624, 1e-05
    %v965 = vadd.f32 %v626, 1e-05
    %v966 = vadd.f32 %v628, 1e-05
    %v967 = vadd.f32 %v630, 1e-05
    %v968 = vadd.f32 %v632, 1e-05
    %v969 = vadd.f32 %v634, 1e-05
    %v970 = vadd.f32 %v636, 1e-05
    %v971 = vadd.f32 %v638, 1e-05
    %v972 = vadd.f32 %v640, 1e-05
    %v973 = vadd.f32 %v642, 1e-05
    %v974 = vadd.f32 %v644, 1e-05
    %v975 = vadd.f32 %v646, 1e-05
    %v976 = vadd.f32 %v648, 1e-05
    %v977 = vadd.f32 %v650, 1e-05
    %v978 = vadd.f32 %v652, 1e-05
    %v979 = vadd.f32 %v654, 1e-05
    %v980 = vadd.f32 %v656, 1e-05
    %v981 = vadd.f32 %v658, 1e-05
    %v982 = vadd.f32 %v660, 1e-05
    %v983 = vadd.f32 %v662, 1e-05
    %v984 = vadd.f32 %v664, 1e-05
    %v985 = vadd.f32 %v666, 1e-05
    %v986 = vadd.f32 %v668, 1e-05
    %v987 = vadd.f32 %v670, 1e-05
    %v988 = vadd.f32 %v672, 1e-05
    %v989 = vadd.f32 %v674, 1e-05
    %v990 = vadd.f32 %v676, 1e-05
    %v991 = vadd.f32 %v678, 1e-05
    %v992 = vadd.f32 %v680, 1e-05
    %v993 = vadd.f32 %v682, 1e-05
    %v994 = vadd.f32 %v684, 1e-05
    %v995 = vadd.f32 %v686, 1e-05
    %v996 = vadd.f32 %v688, 1e-05
    %v997 = vadd.f32 %v690, 1e-05
    %v998 = vadd.f32 %v692, 1e-05
    %v999 = vadd.f32 %v694, 1e-05
    %v1000 = vadd.f32 %v696, 1e-05
    %v1001 = vadd.f32 %v698, 1e-05
    %v1002 = vadd.f32 %v700, 1e-05
    %v1003 = vadd.f32 %v702, 1e-05
    %v1004 = vadd.f32 %v704, 1e-05
    %v1005 = vadd.f32 %v706, 1e-05
    %v1006 = vadd.f32 %v708, 1e-05
    %v1007 = vadd.f32 %v710, 1e-05
    %v1008 = vadd.f32 %v712, 1e-05
    %v1009 = vadd.f32 %v714, 1e-05
    %v1010 = vadd.f32 %v716, 1e-05
    %v1011 = vadd.f32 %v718, 1e-05
    %v1012 = vadd.f32 %v720, 1e-05
    %v1013 = vadd.f32 %v722, 1e-05
    %v1014 = vadd.f32 %v724, 1e-05
    %v1015 = vadd.f32 %v726, 1e-05
    %v1016 = vadd.f32 %v728, 1e-05
    %v1017 = vadd.f32 %v730, 1e-05
    %v1018 = vadd.f32 %v732, 1e-05
    %v1019 = vadd.f32 %v734, 1e-05
    %v1020 = vadd.f32 %v736, 1e-05
    %v1021 = vadd.f32 %v738, 1e-05
    %v1022 = vadd.f32 %v740, 1e-05
    %v1023 = vadd.f32 %v742, 1e-05
    %v1024 = vadd.f32 %v744, 1e-05
    %v1025 = vadd.f32 %v746, 1e-05
    %v1026 = vadd.f32 %v748, 1e-05
    %v1027 = vadd.f32 %v750, 1e-05
    %v1028 = vadd.f32 %v752, 1e-05
    %v1029 = vadd.f32 %v754, 1e-05
    %v1030 = vadd.f32 %v756, 1e-05
    %v1031 = vadd.f32 %v758, 1e-05
    %v1032 = vadd.f32 %v760, 1e-05
    %v1033 = vadd.f32 %v762, 1e-05
    %v1034 = vadd.f32 %v764, 1e-05
    %v1035 = vadd.f32 %v766, 1e-05
    %v1036 = vadd.f32 %v768, 1e-05
    %v1037 = vadd.f32 %v770, 1e-05
    %v1038 = vadd.f32 %v772, 1e-05
    %v1039 = vadd.f32 %v774, 1e-05
    %v1040 = vadd.f32 %v776, 1e-05
    %v1041 = vadd.f32 %v778, 1e-05
    %v1042 = vadd.f32 %v780, 1e-05
    %v1043 = vadd.f32 %v782, 1e-05
    %v1044 = vadd.f32 %v784, 1e-05
    %v1045 = vadd.f32 %v786, 1e-05
    %v1046 = vadd.f32 %v788, 1e-05
    %v1047 = vadd.f32 %v790, 1e-05
    %v1048 = vadd.f32 %v792, 1e-05
    %1049 = vst [vmem:[#allocation5] sm:$0xff] %v793
    %1050 = vst [vmem:[#allocation5 + $0x8] sm:$0xff] %v794
    %1051 = vst [vmem:[#allocation5 + $0x10] sm:$0xff] %v795
    %1052 = vst [vmem:[#allocation5 + $0x18] sm:$0xff] %v796
    %1053 = vst [vmem:[#allocation5 + $0x20] sm:$0xff] %v797
    %1054 = vst [vmem:[#allocation5 + $0x28] sm:$0xff] %v798
    %1055 = vst [vmem:[#allocation5 + $0x30] sm:$0xff] %v799
    %1056 = vst [vmem:[#allocation5 + $0x38] sm:$0xff] %v800
    %1057 = vst [vmem:[#allocation5 + $0x40] sm:$0xff] %v801
    %1058 = vst [vmem:[#allocation5 + $0x48] sm:$0xff] %v802
    %1059 = vst [vmem:[#allocation5 + $0x50] sm:$0xff] %v803
    %1060 = vst [vmem:[#allocation5 + $0x58] sm:$0xff] %v804
    %1061 = vst [vmem:[#allocation5 + $0x60] sm:$0xff] %v805
    %1062 = vst [vmem:[#allocation5 + $0x68] sm:$0xff] %v806
    %1063 = vst [vmem:[#allocation5 + $0x70] sm:$0xff] %v807
    %1064 = vst [vmem:[#allocation5 + $0x78] sm:$0xff] %v808
    %1065 = vst [vmem:[#allocation5 + $0x80] sm:$0xff] %v809
    %1066 = vst [vmem:[#allocation5 + $0x88] sm:$0xff] %v810
    %1067 = vst [vmem:[#allocation5 + $0x90] sm:$0xff] %v811
    %1068 = vst [vmem:[#allocation5 + $0x98] sm:$0xff] %v812
    %1069 = vst [vmem:[#allocation5 + $0xa0] sm:$0xff] %v813
    %1070 = vst [vmem:[#allocation5 + $0xa8] sm:$0xff] %v814
    %1071 = vst [vmem:[#allocation5 + $0xb0] sm:$0xff] %v815
    %1072 = vst [vmem:[#allocation5 + $0xb8] sm:$0xff] %v816
    %1073 = vst [vmem:[#allocation5 + $0xc0] sm:$0xff] %v817
    %1074 = vst [vmem:[#allocation5 + $0xc8] sm:$0xff] %v818
    %1075 = vst [vmem:[#allocation5 + $0xd0] sm:$0xff] %v819
    %1076 = vst [vmem:[#allocation5 + $0xd8] sm:$0xff] %v820
    %1077 = vst [vmem:[#allocation5 + $0xe0] sm:$0xff] %v821
    %1078 = vst [vmem:[#allocation5 + $0xe8] sm:$0xff] %v822
    %1079 = vst [vmem:[#allocation5 + $0xf0] sm:$0xff] %v823
    %1080 = vst [vmem:[#allocation5 + $0xf8] sm:$0xff] %v824
    %1081 = vst [vmem:[#allocation5 + $0x100] sm:$0xff] %v825
    %1082 = vst [vmem:[#allocation5 + $0x108] sm:$0xff] %v826
    %1083 = vst [vmem:[#allocation5 + $0x110] sm:$0xff] %v827
    %1084 = vst [vmem:[#allocation5 + $0x118] sm:$0xff] %v828
    %1085 = vst [vmem:[#allocation5 + $0x120] sm:$0xff] %v829
    %1086 = vst [vmem:[#allocation5 + $0x128] sm:$0xff] %v830
    %1087 = vst [vmem:[#allocation5 + $0x130] sm:$0xff] %v831
    %1088 = vst [vmem:[#allocation5 + $0x138] sm:$0xff] %v832
    %1089 = vst [vmem:[#allocation5 + $0x140] sm:$0xff] %v833
    %1090 = vst [vmem:[#allocation5 + $0x148] sm:$0xff] %v834
    %1091 = vst [vmem:[#allocation5 + $0x150] sm:$0xff] %v835
    %1092 = vst [vmem:[#allocation5 + $0x158] sm:$0xff] %v836
    %1093 = vst [vmem:[#allocation5 + $0x160] sm:$0xff] %v837
    %1094 = vst [vmem:[#allocation5 + $0x168] sm:$0xff] %v838
    %1095 = vst [vmem:[#allocation5 + $0x170] sm:$0xff] %v839
    %1096 = vst [vmem:[#allocation5 + $0x178] sm:$0xff] %v840
    %1097 = vst [vmem:[#allocation5 + $0x180] sm:$0xff] %v841
    %1098 = vst [vmem:[#allocation5 + $0x188] sm:$0xff] %v842
    %1099 = vst [vmem:[#allocation5 + $0x190] sm:$0xff] %v843
    %1100 = vst [vmem:[#allocation5 + $0x198] sm:$0xff] %v844
    %1101 = vst [vmem:[#allocation5 + $0x1a0] sm:$0xff] %v845
    %1102 = vst [vmem:[#allocation5 + $0x1a8] sm:$0xff] %v846
    %1103 = vst [vmem:[#allocation5 + $0x1b0] sm:$0xff] %v847
    %1104 = vst [vmem:[#allocation5 + $0x1b8] sm:$0xff] %v848
    %1105 = vst [vmem:[#allocation5 + $0x1c0] sm:$0xff] %v849
    %1106 = vst [vmem:[#allocation5 + $0x1c8] sm:$0xff] %v850
    %1107 = vst [vmem:[#allocation5 + $0x1d0] sm:$0xff] %v851
    %1108 = vst [vmem:[#allocation5 + $0x1d8] sm:$0xff] %v852
    %1109 = vst [vmem:[#allocation5 + $0x1e0] sm:$0xff] %v853
    %1110 = vst [vmem:[#allocation5 + $0x1e8] sm:$0xff] %v854
    %1111 = vst [vmem:[#allocation5 + $0x1f0] sm:$0xff] %v855
    %1112 = vst [vmem:[#allocation5 + $0x1f8] sm:$0xff] %v856
    %1113 = vst [vmem:[#allocation5 + $0x200] sm:$0xff] %v857
    %1114 = vst [vmem:[#allocation5 + $0x208] sm:$0xff] %v858
    %1115 = vst [vmem:[#allocation5 + $0x210] sm:$0xff] %v859
    %1116 = vst [vmem:[#allocation5 + $0x218] sm:$0xff] %v860
    %1117 = vst [vmem:[#allocation5 + $0x220] sm:$0xff] %v861
    %1118 = vst [vmem:[#allocation5 + $0x228] sm:$0xff] %v862
    %1119 = vst [vmem:[#allocation5 + $0x230] sm:$0xff] %v863
    %1120 = vst [vmem:[#allocation5 + $0x238] sm:$0xff] %v864
    %1121 = vst [vmem:[#allocation5 + $0x240] sm:$0xff] %v865
    %1122 = vst [vmem:[#allocation5 + $0x248] sm:$0xff] %v866
    %1123 = vst [vmem:[#allocation5 + $0x250] sm:$0xff] %v867
    %1124 = vst [vmem:[#allocation5 + $0x258] sm:$0xff] %v868
    %1125 = vst [vmem:[#allocation5 + $0x260] sm:$0xff] %v869
    %1126 = vst [vmem:[#allocation5 + $0x268] sm:$0xff] %v870
    %1127 = vst [vmem:[#allocation5 + $0x270] sm:$0xff] %v871
    %1128 = vst [vmem:[#allocation5 + $0x278] sm:$0xff] %v872
    %1129 = vst [vmem:[#allocation5 + $0x280] sm:$0xff] %v873
    %1130 = vst [vmem:[#allocation5 + $0x288] sm:$0xff] %v874
    %1131 = vst [vmem:[#allocation5 + $0x290] sm:$0xff] %v875
    %1132 = vst [vmem:[#allocation5 + $0x298] sm:$0xff] %v876
    %1133 = vst [vmem:[#allocation5 + $0x2a0] sm:$0xff] %v877
    %1134 = vst [vmem:[#allocation5 + $0x2a8] sm:$0xff] %v878
    %1135 = vst [vmem:[#allocation5 + $0x2b0] sm:$0xff] %v879
    %1136 = vst [vmem:[#allocation5 + $0x2b8] sm:$0xff] %v880
    %1137 = vst [vmem:[#allocation5 + $0x2c0] sm:$0xff] %v881
    %1138 = vst [vmem:[#allocation5 + $0x2c8] sm:$0xff] %v882
    %1139 = vst [vmem:[#allocation5 + $0x2d0] sm:$0xff] %v883
    %1140 = vst [vmem:[#allocation5 + $0x2d8] sm:$0xff] %v884
    %1141 = vst [vmem:[#allocation5 + $0x2e0] sm:$0xff] %v885
    %1142 = vst [vmem:[#allocation5 + $0x2e8] sm:$0xff] %v886
    %1143 = vst [vmem:[#allocation5 + $0x2f0] sm:$0xff] %v887
    %1144 = vst [vmem:[#allocation5 + $0x2f8] sm:$0xff] %v888
    %1145 = vst [vmem:[#allocation5 + $0x300] sm:$0xff] %v889
    %1146 = vst [vmem:[#allocation5 + $0x308] sm:$0xff] %v890
    %1147 = vst [vmem:[#allocation5 + $0x310] sm:$0xff] %v891
    %1148 = vst [vmem:[#allocation5 + $0x318] sm:$0xff] %v892
    %1149 = vst [vmem:[#allocation5 + $0x320] sm:$0xff] %v893
    %1150 = vst [vmem:[#allocation5 + $0x328] sm:$0xff] %v894
    %1151 = vst [vmem:[#allocation5 + $0x330] sm:$0xff] %v895
    %1152 = vst [vmem:[#allocation5 + $0x338] sm:$0xff] %v896
    %1153 = vst [vmem:[#allocation5 + $0x340] sm:$0xff] %v897
    %1154 = vst [vmem:[#allocation5 + $0x348] sm:$0xff] %v898
    %1155 = vst [vmem:[#allocation5 + $0x350] sm:$0xff] %v899
    %1156 = vst [vmem:[#allocation5 + $0x358] sm:$0xff] %v900
    %1157 = vst [vmem:[#allocation5 + $0x360] sm:$0xff] %v901
    %1158 = vst [vmem:[#allocation5 + $0x368] sm:$0xff] %v902
    %1159 = vst [vmem:[#allocation5 + $0x370] sm:$0xff] %v903
    %1160 = vst [vmem:[#allocation5 + $0x378] sm:$0xff] %v904
    %1161 = vst [vmem:[#allocation5 + $0x380] sm:$0xff] %v905
    %1162 = vst [vmem:[#allocation5 + $0x388] sm:$0xff] %v906
    %1163 = vst [vmem:[#allocation5 + $0x390] sm:$0xff] %v907
    %1164 = vst [vmem:[#allocation5 + $0x398] sm:$0xff] %v908
    %1165 = vst [vmem:[#allocation5 + $0x3a0] sm:$0xff] %v909
    %1166 = vst [vmem:[#allocation5 + $0x3a8] sm:$0xff] %v910
    %1167 = vst [vmem:[#allocation5 + $0x3b0] sm:$0xff] %v911
    %1168 = vst [vmem:[#allocation5 + $0x3b8] sm:$0xff] %v912
    %1169 = vst [vmem:[#allocation5 + $0x3c0] sm:$0xff] %v913
    %1170 = vst [vmem:[#allocation5 + $0x3c8] sm:$0xff] %v914
    %1171 = vst [vmem:[#allocation5 + $0x3d0] sm:$0xff] %v915
    %1172 = vst [vmem:[#allocation5 + $0x3d8] sm:$0xff] %v916
    %1173 = vst [vmem:[#allocation5 + $0x3e0] sm:$0xff] %v917
    %1174 = vst [vmem:[#allocation5 + $0x3e8] sm:$0xff] %v918
    %1175 = vst [vmem:[#allocation5 + $0x3f0] sm:$0xff] %v919
    %1176 = vst [vmem:[#allocation5 + $0x3f8] sm:$0xff] %v920
    %1177 = vst [vmem:[#allocation5 + $0x400] sm:$0xff] %v921
    %1178 = vst [vmem:[#allocation5 + $0x408] sm:$0xff] %v922
    %1179 = vst [vmem:[#allocation5 + $0x410] sm:$0xff] %v923
    %1180 = vst [vmem:[#allocation5 + $0x418] sm:$0xff] %v924
    %1181 = vst [vmem:[#allocation5 + $0x420] sm:$0xff] %v925
    %1182 = vst [vmem:[#allocation5 + $0x428] sm:$0xff] %v926
    %1183 = vst [vmem:[#allocation5 + $0x430] sm:$0xff] %v927
    %1184 = vst [vmem:[#allocation5 + $0x438] sm:$0xff] %v928
    %1185 = vst [vmem:[#allocation5 + $0x440] sm:$0xff] %v929
    %1186 = vst [vmem:[#allocation5 + $0x448] sm:$0xff] %v930
    %1187 = vst [vmem:[#allocation5 + $0x450] sm:$0xff] %v931
    %1188 = vst [vmem:[#allocation5 + $0x458] sm:$0xff] %v932
    %1189 = vst [vmem:[#allocation5 + $0x460] sm:$0xff] %v933
    %1190 = vst [vmem:[#allocation5 + $0x468] sm:$0xff] %v934
    %1191 = vst [vmem:[#allocation5 + $0x470] sm:$0xff] %v935
    %1192 = vst [vmem:[#allocation5 + $0x478] sm:$0xff] %v936
    %1193 = vst [vmem:[#allocation5 + $0x480] sm:$0xff] %v937
    %1194 = vst [vmem:[#allocation5 + $0x488] sm:$0xff] %v938
    %1195 = vst [vmem:[#allocation5 + $0x490] sm:$0xff] %v939
    %1196 = vst [vmem:[#allocation5 + $0x498] sm:$0xff] %v940
    %1197 = vst [vmem:[#allocation5 + $0x4a0] sm:$0xff] %v941
    %1198 = vst [vmem:[#allocation5 + $0x4a8] sm:$0xff] %v942
    %1199 = vst [vmem:[#allocation5 + $0x4b0] sm:$0xff] %v943
    %1200 = vst [vmem:[#allocation5 + $0x4b8] sm:$0xff] %v944
    %1201 = vst [vmem:[#allocation5 + $0x4c0] sm:$0xff] %v945
    %1202 = vst [vmem:[#allocation5 + $0x4c8] sm:$0xff] %v946
    %1203 = vst [vmem:[#allocation5 + $0x4d0] sm:$0xff] %v947
    %1204 = vst [vmem:[#allocation5 + $0x4d8] sm:$0xff] %v948
    %1205 = vst [vmem:[#allocation5 + $0x4e0] sm:$0xff] %v949
    %1206 = vst [vmem:[#allocation5 + $0x4e8] sm:$0xff] %v950
    %1207 = vst [vmem:[#allocation5 + $0x4f0] sm:$0xff] %v951
    %1208 = vst [vmem:[#allocation5 + $0x4f8] sm:$0xff] %v952
    %1209 = vst [vmem:[#allocation5 + $0x500] sm:$0xff] %v953
    %1210 = vst [vmem:[#allocation5 + $0x508] sm:$0xff] %v954
    %1211 = vst [vmem:[#allocation5 + $0x510] sm:$0xff] %v955
    %1212 = vst [vmem:[#allocation5 + $0x518] sm:$0xff] %v956
    %1213 = vst [vmem:[#allocation5 + $0x520] sm:$0xff] %v957
    %1214 = vst [vmem:[#allocation5 + $0x528] sm:$0xff] %v958
    %1215 = vst [vmem:[#allocation5 + $0x530] sm:$0xff] %v959
    %1216 = vst [vmem:[#allocation5 + $0x538] sm:$0xff] %v960
    %1217 = vst [vmem:[#allocation5 + $0x540] sm:$0xff] %v961
    %1218 = vst [vmem:[#allocation5 + $0x548] sm:$0xff] %v962
    %1219 = vst [vmem:[#allocation5 + $0x550] sm:$0xff] %v963
    %1220 = vst [vmem:[#allocation5 + $0x558] sm:$0xff] %v964
    %1221 = vst [vmem:[#allocation5 + $0x560] sm:$0xff] %v965
    %1222 = vst [vmem:[#allocation5 + $0x568] sm:$0xff] %v966
    %1223 = vst [vmem:[#allocation5 + $0x570] sm:$0xff] %v967
    %1224 = vst [vmem:[#allocation5 + $0x578] sm:$0xff] %v968
    %1225 = vst [vmem:[#allocation5 + $0x580] sm:$0xff] %v969
    %1226 = vst [vmem:[#allocation5 + $0x588] sm:$0xff] %v970
    %1227 = vst [vmem:[#allocation5 + $0x590] sm:$0xff] %v971
    %1228 = vst [vmem:[#allocation5 + $0x598] sm:$0xff] %v972
    %1229 = vst [vmem:[#allocation5 + $0x5a0] sm:$0xff] %v973
    %1230 = vst [vmem:[#allocation5 + $0x5a8] sm:$0xff] %v974
    %1231 = vst [vmem:[#allocation5 + $0x5b0] sm:$0xff] %v975
    %1232 = vst [vmem:[#allocation5 + $0x5b8] sm:$0xff] %v976
    %1233 = vst [vmem:[#allocation5 + $0x5c0] sm:$0xff] %v977
    %1234 = vst [vmem:[#allocation5 + $0x5c8] sm:$0xff] %v978
    %1235 = vst [vmem:[#allocation5 + $0x5d0] sm:$0xff] %v979
    %1236 = vst [vmem:[#allocation5 + $0x5d8] sm:$0xff] %v980
    %1237 = vst [vmem:[#allocation5 + $0x5e0] sm:$0xff] %v981
    %1238 = vst [vmem:[#allocation5 + $0x5e8] sm:$0xff] %v982
    %1239 = vst [vmem:[#allocation5 + $0x5f0] sm:$0xff] %v983
    %1240 = vst [vmem:[#allocation5 + $0x5f8] sm:$0xff] %v984
    %1241 = vst [vmem:[#allocation5 + $0x600] sm:$0xff] %v985
    %1242 = vst [vmem:[#allocation5 + $0x608] sm:$0xff] %v986
    %1243 = vst [vmem:[#allocation5 + $0x610] sm:$0xff] %v987
    %1244 = vst [vmem:[#allocation5 + $0x618] sm:$0xff] %v988
    %1245 = vst [vmem:[#allocation5 + $0x620] sm:$0xff] %v989
    %1246 = vst [vmem:[#allocation5 + $0x628] sm:$0xff] %v990
    %1247 = vst [vmem:[#allocation5 + $0x630] sm:$0xff] %v991
    %1248 = vst [vmem:[#allocation5 + $0x638] sm:$0xff] %v992
    %1249 = vst [vmem:[#allocation5 + $0x640] sm:$0xff] %v993
    %1250 = vst [vmem:[#allocation5 + $0x648] sm:$0xff] %v994
    %1251 = vst [vmem:[#allocation5 + $0x650] sm:$0xff] %v995
    %1252 = vst [vmem:[#allocation5 + $0x658] sm:$0xff] %v996
    %1253 = vst [vmem:[#allocation5 + $0x660] sm:$0xff] %v997
    %1254 = vst [vmem:[#allocation5 + $0x668] sm:$0xff] %v998
    %1255 = vst [vmem:[#allocation5 + $0x670] sm:$0xff] %v999
    %1256 = vst [vmem:[#allocation5 + $0x678] sm:$0xff] %v1000
    %1257 = vst [vmem:[#allocation5 + $0x680] sm:$0xff] %v1001
    %1258 = vst [vmem:[#allocation5 + $0x688] sm:$0xff] %v1002
    %1259 = vst [vmem:[#allocation5 + $0x690] sm:$0xff] %v1003
    %1260 = vst [vmem:[#allocation5 + $0x698] sm:$0xff] %v1004
    %1261 = vst [vmem:[#allocation5 + $0x6a0] sm:$0xff] %v1005
    %1262 = vst [vmem:[#allocation5 + $0x6a8] sm:$0xff] %v1006
    %1263 = vst [vmem:[#allocation5 + $0x6b0] sm:$0xff] %v1007
    %1264 = vst [vmem:[#allocation5 + $0x6b8] sm:$0xff] %v1008
    %1265 = vst [vmem:[#allocation5 + $0x6c0] sm:$0xff] %v1009
    %1266 = vst [vmem:[#allocation5 + $0x6c8] sm:$0xff] %v1010
    %1267 = vst [vmem:[#allocation5 + $0x6d0] sm:$0xff] %v1011
    %1268 = vst [vmem:[#allocation5 + $0x6d8] sm:$0xff] %v1012
    %1269 = vst [vmem:[#allocation5 + $0x6e0] sm:$0xff] %v1013
    %1270 = vst [vmem:[#allocation5 + $0x6e8] sm:$0xff] %v1014
    %1271 = vst [vmem:[#allocation5 + $0x6f0] sm:$0xff] %v1015
    %1272 = vst [vmem:[#allocation5 + $0x6f8] sm:$0xff] %v1016
    %1273 = vst [vmem:[#allocation5 + $0x700] sm:$0xff] %v1017
    %1274 = vst [vmem:[#allocation5 + $0x708] sm:$0xff] %v1018
    %1275 = vst [vmem:[#allocation5 + $0x710] sm:$0xff] %v1019
    %1276 = vst [vmem:[#allocation5 + $0x718] sm:$0xff] %v1020
    %1277 = vst [vmem:[#allocation5 + $0x720] sm:$0xff] %v1021
    %1278 = vst [vmem:[#allocation5 + $0x728] sm:$0xff] %v1022
    %1279 = vst [vmem:[#allocation5 + $0x730] sm:$0xff] %v1023
    %1280 = vst [vmem:[#allocation5 + $0x738] sm:$0xff] %v1024
    %1281 = vst [vmem:[#allocation5 + $0x740] sm:$0xff] %v1025
    %1282 = vst [vmem:[#allocation5 + $0x748] sm:$0xff] %v1026
    %1283 = vst [vmem:[#allocation5 + $0x750] sm:$0xff] %v1027
    %1284 = vst [vmem:[#allocation5 + $0x758] sm:$0xff] %v1028
    %1285 = vst [vmem:[#allocation5 + $0x760] sm:$0xff] %v1029
    %1286 = vst [vmem:[#allocation5 + $0x768] sm:$0xff] %v1030
    %1287 = vst [vmem:[#allocation5 + $0x770] sm:$0xff] %v1031
    %1288 = vst [vmem:[#allocation5 + $0x778] sm:$0xff] %v1032
    %1289 = vst [vmem:[#allocation5 + $0x780] sm:$0x1f] %v1033
    %1290 = vst [vmem:[#allocation5 + $0x788] sm:$0x1f] %v1034
    %1291 = vst [vmem:[#allocation5 + $0x790] sm:$0x1f] %v1035
    %1292 = vst [vmem:[#allocation5 + $0x798] sm:$0x1f] %v1036
    %1293 = vst [vmem:[#allocation5 + $0x7a0] sm:$0x1f] %v1037
    %1294 = vst [vmem:[#allocation5 + $0x7a8] sm:$0x1f] %v1038
    %1295 = vst [vmem:[#allocation5 + $0x7b0] sm:$0x1f] %v1039
    %1296 = vst [vmem:[#allocation5 + $0x7b8] sm:$0x1f] %v1040
    %1297 = vst [vmem:[#allocation5 + $0x7c0] sm:$0x1f] %v1041
    %1298 = vst [vmem:[#allocation5 + $0x7c8] sm:$0x1f] %v1042
    %1299 = vst [vmem:[#allocation5 + $0x7d0] sm:$0x1f] %v1043
    %1300 = vst [vmem:[#allocation5 + $0x7d8] sm:$0x1f] %v1044
    %1301 = vst [vmem:[#allocation5 + $0x7e0] sm:$0x1f] %v1045
    %1302 = vst [vmem:[#allocation5 + $0x7e8] sm:$0x1f] %v1046
    %1303 = vst [vmem:[#allocation5 + $0x7f0] sm:$0x1f] %v1047
    %1304 = vst [vmem:[#allocation5 + $0x7f8] sm:$0x1f] %v1048
    // Predicated region
    $region10: #{tpu_custom_call.1} parent=1 // pred_check
      _
    $region11: #{tpu_custom_call.1} parent=1 // pred_check_branch
      %1306 = sbr.rel (0) target = $region13
    $region12: #{tpu_custom_call.1} parent=1 // pred_region
      %1308 = vsyncadd [#allocation4], 0
      %s1309 = sshll.u32 [#allocation5], 4
      %s1310 = int_to_ptr.vmem [resolvable:$true] %s1309
      %s1311 = sshll.u32 %s1, 4
      %s1312 = int_to_ptr.hbm [resolvable:$true] %s1311
      %1317 = dma.vmem_to_hbm [thread:$0]  %s1310, 32768, %s1312, [#allocation4], 2048, 2048, 128
    $region13: #{tpu_custom_call.1} parent=1 // pred_fallthru
      _
    // Predicated region
    $region14: #{tpu_custom_call.1} parent=1 // pred_check
      _
    $region15: #{tpu_custom_call.1} parent=1 // pred_check_branch
      %1319 = sbr.rel (0) target = $region17
    $region16: #{tpu_custom_call.1} parent=1 // pred_region
      %1321 = dma.done [#allocation4], 32768
    $region17: #{tpu_custom_call.1} parent=1 // pred_fallthru
      _
    %1322 = vsyncpa [#allocation3], 1
    %1323 = vsyncpa [#allocation4], 1

</llo_original>
